<compile_context>
chip_gen: v5e
topology: v5e:2x2
jax: 0.10.0
libtpu: 0.0.40
codegen_flags: <defaults>
</compile_context>

<pallas_src>
import functools

import jax
import jax.numpy as jnp
from jax.experimental import pallas as pl
from jax.experimental.pallas import tpu as pltpu


# --------------------------------------------------------------------------- kernels
def _pwff_resident_kernel(x_ref, w1_ref, b1_ref, w2_ref, b2_ref, o_ref):
    # x_ref: [tm, hid], w1_ref: [hid, pf], b1_ref: [1, pf], w2_ref: [pf, hid], b2_ref: [1, hid]
    cdt = w1_ref.dtype                      # compute dtype follows the weights (bf16-able)
    x = x_ref[...]
    if x.dtype != cdt:
        x = x.astype(cdt)
    h = jnp.dot(x, w1_ref[...], preferred_element_type=jnp.float32)
    h = jnp.maximum(h + b1_ref[...].astype(jnp.float32), 0.0)
    # TODO(synk): dropout omitted (inference-mode identity); training parity would need
    # pltpu.prng_seed/prng_random_bits masking + 1/(1-p) scaling here.
    y = jnp.dot(h.astype(cdt), w2_ref[...], preferred_element_type=jnp.float32)
    o_ref[...] = (y + b2_ref[...].astype(jnp.float32)).astype(o_ref.dtype)


def _pwff_chunked_kernel(x_ref, w1_ref, b1_ref, w2_ref, b2_ref, o_ref, acc_ref):
    # Grid: (row_tiles, pf_chunks).  acc_ref: [tm, hid] f32 accumulator across pf chunks.
    k = pl.program_id(1)

    @pl.when(k == 0)
    def _():
        acc_ref[...] = jnp.zeros_like(acc_ref)

    cdt = w1_ref.dtype
    x = x_ref[...]
    if x.dtype != cdt:
        x = x.astype(cdt)
    h = jnp.dot(x, w1_ref[...], preferred_element_type=jnp.float32)
    h = jnp.maximum(h + b1_ref[...].astype(jnp.float32), 0.0)
    # TODO(synk): dropout omitted (inference-mode identity).
    acc_ref[...] += jnp.dot(h.astype(cdt), w2_ref[...], preferred_element_type=jnp.float32)

    @pl.when(k == pl.num_programs(1) - 1)
    def _():
        o_ref[...] = (acc_ref[...] + b2_ref[...].astype(jnp.float32)).astype(o_ref.dtype)


# --------------------------------------------------------------------------- planning
def _round_up(n, m):
    return ((n + m - 1) // m) * m


def _sublane_rows(dtype):
    return {4: 8, 2: 16, 1: 32}.get(jnp.dtype(dtype).itemsize, 8)


def _generation():
    kind = ""
    try:
        kind = jax.devices()[0].device_kind.lower()
    except Exception:
        pass
    if "v5" in kind:
        return "v5"
    if "v6" in kind:
        return "v6"
    if "v7" in kind:
        return "v7"
    return "unknown"


def _vmem_capacity_bytes():
    try:
        cap = int(pltpu.get_tpu_info().vmem_capacity_bytes)
        if cap > 0:
            return cap
    except Exception:
        pass
    # Fallback: v5e/v6e have 128 MiB VMEM per TC; assume the smaller v7x (64 MiB) otherwise.
    return (128 << 20) if _generation() in ("v5", "v6") else (64 << 20)


def _plan(M, hid, pf, x_dtype, w_dtype, tm_user, pf_chunk_user):
    """Pick (row_tile, pf_chunk, vmem_limit_bytes) per generation and VMEM budget."""
    it_x = jnp.dtype(x_dtype).itemsize
    it_w = jnp.dtype(w_dtype).itemsize
    sub = _sublane_rows(x_dtype)
    gen = _generation()

    vmem_cap = _vmem_capacity_bytes()
    vmem_limit = min((3 * vmem_cap) // 4, 100 << 20)   # 96 MiB on v5e/v6e, 48 MiB on v7x
    budget = (vmem_limit * 7) // 8                     # headroom for compiler scratch

    # Row-tile targets (weight re-streaming roofline in the chunked case).
    tm_resident = {"v5": 256, "v6": 512}.get(gen, 512)
    tm_chunked = {"v5": 256, "v6": 1024}.get(gen, 512)
    # MXU is 128-wide on v5e, 256-wide on v6e/v7x -> prefer 256-multiple pf chunks there.
    chunk_cands = (4096, 2048, 1024, 512, 256, 128) if gen == "v5" else (4096, 2048, 1024, 512, 256)

    if tm_user is not None:
        tm_resident = tm_chunked = tm_user

    def clamp_tm(tm):
        if M <= tm:
            return M                      # single block equal to the full row extent
        return max(sub, _round_up(tm, sub))

    def ws_resident(tm):
        return (2 * tm * hid * it_x            # x tile, double-buffered
                + 2 * tm * hid * it_x          # out tile, double-buffered
                + tm * pf * 4                  # f32 h temporary
                + tm * pf * it_w               # h cast for the 2nd dot
                + 2 * hid * pf * it_w          # W1 + W2 resident, single-buffered
                + (pf + hid) * it_w)           # biases

    def ws_chunked(tm, c):
        return (2 * tm * hid * it_x
                + 2 * tm * hid * it_x
                + tm * hid * 4                 # f32 accumulator scratch
                + tm * c * 4                   # f32 h temporary
                + tm * c * it_w                # h cast
                + 4 * hid * c * it_w           # W1/W2 chunks, double-buffered
                + (pf + hid) * it_w)

    # Prefer the resident path: no K axis, no accumulator passes, weights read once.
    if pf_chunk_user in (None, pf):
        tm = clamp_tm(tm_resident)
        if pf_chunk_user == pf or ws_resident(tm) <= budget:
            return tm, pf, vmem_limit

    # Chunked path.
    tm = clamp_tm(tm_chunked)
    if pf_chunk_user is not None:
        return tm, pf_chunk_user, vmem_limit
    while True:
        fits = [c for c in chunk_cands if pf % c == 0 and ws_chunked(tm, c) <= budget]
        if fits:
            return tm, max(fits), vmem_limit
        if tm_user is not None or tm <= 256:
            divs = [c for c in chunk_cands if pf % c == 0]
            if divs:                       # smallest divisor fallback (never full pf)
                return tm, min(divs), vmem_limit
            return tm, pf, vmem_limit      # nothing divides pf; rely on vmem_limit
        tm = clamp_tm(tm // 2)


def _single_buffered(shape, index_map):
    """BlockSpec for a block whose index never changes across the grid (constant weights)."""
    try:
        return pl.BlockSpec(shape, index_map, pipeline_mode=pl.Buffered(1))
    except Exception:
        return pl.BlockSpec(shape, index_map)


# --------------------------------------------------------------------------- wrapper
@functools.partial(jax.jit, static_argnames=("tm", "pf_chunk", "weights_in_bf16"))
def positionwise_feedforward(x, w1, b1, w2, b2, *, tm=None, pf_chunk=None,
                             weights_in_bf16=False):
    """x: [B, S, hid] -> [B, S, hid]   (y = relu(x @ W1 + b1) @ W2 + b2)."""
    B, S, hid = x.shape
    pf = w1.shape[1]
    M = B * S

    if weights_in_bf16 and w1.dtype == jnp.float32:
        w1 = w1.astype(jnp.bfloat16)
        w2 = w2.astype(jnp.bfloat16)

    tm_eff, chunk, vmem_limit = _plan(M, hid, pf, x.dtype, w1.dtype, tm, pf_chunk)
    assert pf % chunk == 0, "pf_chunk must divide pf_dim"
    n_rows = pl.cdiv(M, tm_eff)
    n_k = pf // chunk

    x2d = x.reshape(M, hid)     # metadata-only reshape; no pad/slice copies around the kernel

    if n_k == 1:
        # Resident path: weights fully in VMEM (single-buffered), 1-D grid over row tiles.
        out2d = pl.pallas_call(
            _pwff_resident_kernel,
            out_shape=jax.ShapeDtypeStruct((M, hid), x.dtype),
            grid_spec=pltpu.PrefetchScalarGridSpec(
                num_scalar_prefetch=0,
                grid=(n_rows,),
                in_specs=[
                    pl.BlockSpec((tm_eff, hid), lambda i: (i, 0)),      # x row tile
                    _single_buffered((hid, pf), lambda i: (0, 0)),      # W1
                    _single_buffered((1, pf), lambda i: (0, 0)),        # b1
                    _single_buffered((pf, hid), lambda i: (0, 0)),      # W2
                    _single_buffered((1, hid), lambda i: (0, 0)),       # b2
                ],
                out_specs=pl.BlockSpec((tm_eff, hid), lambda i: (i, 0)),
            ),
            compiler_params=pltpu.CompilerParams(
                dimension_semantics=("parallel",),
                vmem_limit_bytes=vmem_limit,
            ),
        )(x2d, w1, b1, w2, b2)
    else:
        # Chunked path: pf split on an "arbitrary" K axis with a f32 VMEM accumulator.
        out2d = pl.pallas_call(
            _pwff_chunked_kernel,
            out_shape=jax.ShapeDtypeStruct((M, hid), x.dtype),
            grid_spec=pltpu.PrefetchScalarGridSpec(
                num_scalar_prefetch=0,
                grid=(n_rows, n_k),
                in_specs=[
                    pl.BlockSpec((tm_eff, hid), lambda i, k: (i, 0)),   # x row tile
                    pl.BlockSpec((hid, chunk), lambda i, k: (0, k)),    # W1 chunk
                    pl.BlockSpec((1, chunk), lambda i, k: (0, k)),      # b1 chunk
                    pl.BlockSpec((chunk, hid), lambda i, k: (k, 0)),    # W2 chunk
                    _single_buffered((1, hid), lambda i, k: (0, 0)),    # b2 (constant)
                ],
                out_specs=pl.BlockSpec((tm_eff, hid), lambda i, k: (i, 0)),
                scratch_shapes=[pltpu.VMEM((tm_eff, hid), jnp.float32)],
            ),
            compiler_params=pltpu.CompilerParams(
                dimension_semantics=("parallel", "arbitrary"),
                vmem_limit_bytes=vmem_limit,
            ),
        )(x2d, w1, b1, w2, b2)

    return out2d.reshape(B, S, hid)


# --------------------------------------------------------------------------- params / test
def init_params(key, hid_dim, pf_dim, dtype=jnp.float32):
    """Synthetic params matching Conv1d(hid,pf,1) / Conv1d(pf,hid,1).

    PyTorch Conv1d weight is [out_ch, in_ch, 1]; we store the transposed matmul form:
    W1 = weight1[:, :, 0].T -> [hid, pf], W2 -> [pf, hid]; biases kept 2D [1, dim].
    """
    k1, k2, k3, k4 = jax.random.split(key, 4)
    bound1 = 1.0 / (hid_dim ** 0.5)
    bound2 = 1.0 / (pf_dim ** 0.5)
    w1 = jax.random.uniform(k1, (hid_dim, pf_dim), dtype, -bound1, bound1)
    b1 = jax.random.uniform(k2, (1, pf_dim), dtype, -bound1, bound1)
    w2 = jax.random.uniform(k3, (pf_dim, hid_dim), dtype, -bound2, bound2)
    b2 = jax.random.uniform(k4, (1, hid_dim), dtype, -bound2, bound2)
    return w1, b1, w2, b2


if __name__ == "__main__":
    key = jax.random.PRNGKey(0)

    def ref_ffn(x, w1, b1, w2, b2):
        hp = jax.lax.Precision.HIGHEST
        h = jnp.maximum(jnp.dot(x, w1, precision=hp) + b1[0], 0.0)
        return jnp.dot(h, w2, precision=hp) + b2[0]

    # Case 1: small module-like shapes -> resident path, weights single-buffered, 1-D grid.
    B, S, HID, PF = 2, 8, 32, 64
    kx, kp, key = jax.random.split(key, 3)
    x = jax.random.normal(kx, (B, S, HID), jnp.float32)
    params = init_params(kp, HID, PF)
    out = jax.block_until_ready(positionwise_feedforward(x, *params))
    assert out.shape == (B, S, HID)
    assert jnp.allclose(out, ref_ffn(x, *params), atol=1e-4, rtol=1e-4)

    # Case 2: forces the chunked path (pf_chunk < pf): "arbitrary" K axis + f32 accumulator,
    # with an M (=14) that is not a sublane multiple (block equals the full row extent).
    B2, S2, HID2, PF2 = 2, 7, 128, 256
    kx2, kp2, key = jax.random.split(key, 3)
    x2 = jax.random.normal(kx2, (B2, S2, HID2), jnp.float32)
    params2 = init_params(kp2, HID2, PF2)
    out2 = jax.block_until_ready(positionwise_feedforward(x2, *params2, pf_chunk=128))
    assert out2.shape == (B2, S2, HID2)
    assert jnp.allclose(out2, ref_ffn(x2, *params2), atol=1e-4, rtol=1e-4)

    # Case 3: exercises the ragged last row tile (M=150 with tm=64 -> 3 blocks, last partial),
    # i.e. the no-pad/no-slice path where Pallas masks the tail writes.
    B3, S3, HID3, PF3 = 3, 50, 128, 256
    kx3, kp3, key = jax.random.split(key, 3)
    x3 = jax.random.normal(kx3, (B3, S3, HID3), jnp.float32)
    params3 = init_params(kp3, HID3, PF3)
    out3 = jax.block_until_ready(positionwise_feedforward(x3, *params3, tm=64))
    assert out3.shape == (B3, S3, HID3)
    assert jnp.allclose(out3, ref_ffn(x3, *params3), atol=1e-4, rtol=1e-4)

    print("KERNEL_OK")
</pallas_src>

<mosaic_0001>
module attributes {stable_mosaic.version = 11 : i64} {
  func.func @_pwff_resident_kernel(%arg0: i32, %arg1: memref<16x32xf32, #tpu.memory_space<vmem>>, %arg2: memref<32x64xf32, #tpu.memory_space<vmem>>, %arg3: memref<1x64xf32, #tpu.memory_space<vmem>>, %arg4: memref<64x32xf32, #tpu.memory_space<vmem>>, %arg5: memref<1x32xf32, #tpu.memory_space<vmem>>, %arg6: memref<16x32xf32, #tpu.memory_space<vmem>>) attributes {dimension_semantics = [#tpu.dimension_semantics<parallel>], iteration_bounds = array<i64: 1>, scalar_prefetch = 0 : i64, scratch_operands = 0 : i64, tpu.core_type = #tpu.core_type<tc>, window_params = [{transform_indices = @transform_0, window_bounds = array<i64: 16, 32>}, {pipeline_mode = #tpu.pipeline_mode<synchronous>, transform_indices = @transform_1, window_bounds = array<i64: 32, 64>}, {pipeline_mode = #tpu.pipeline_mode<synchronous>, transform_indices = @transform_2, window_bounds = array<i64: 1, 64>}, {pipeline_mode = #tpu.pipeline_mode<synchronous>, transform_indices = @transform_3, window_bounds = array<i64: 64, 32>}, {pipeline_mode = #tpu.pipeline_mode<synchronous>, transform_indices = @transform_4, window_bounds = array<i64: 1, 32>}, {transform_indices = @transform_5, window_bounds = array<i64: 16, 32>}]} {
    %c0 = arith.constant 0 : index
    %c0_0 = arith.constant 0 : index
    %0 = vector.load %arg1[%c0, %c0_0] : memref<16x32xf32, #tpu.memory_space<vmem>>, vector<16x32xf32>
    %c0_1 = arith.constant 0 : index
    %c0_2 = arith.constant 0 : index
    %1 = vector.load %arg2[%c0_1, %c0_2] : memref<32x64xf32, #tpu.memory_space<vmem>>, vector<32x64xf32>
    %cst = arith.constant dense<0.000000e+00> : vector<16x64xf32>
    %2 = tpu.matmul %0, %1, %cst {dimension_numbers = #tpu.dot_dimension_numbers<[1], [0], [0], [1], [0, 0, 1, 1], [], []>} : vector<16x32xf32>, vector<32x64xf32>, vector<16x64xf32> -> vector<16x64xf32>
    %c0_3 = arith.constant 0 : index
    %c0_4 = arith.constant 0 : index
    %3 = vector.load %arg3[%c0_3, %c0_4] : memref<1x64xf32, #tpu.memory_space<vmem>>, vector<1x64xf32>
    %4 = vector.broadcast %3 : vector<1x64xf32> to vector<16x64xf32>
    %5 = arith.addf %2, %4 : vector<16x64xf32>
    %cst_5 = arith.constant 0.000000e+00 : f32
    %6 = vector.broadcast %cst_5 : f32 to vector<16x64xf32>
    %7 = arith.maximumf %5, %6 : vector<16x64xf32>
    %c0_6 = arith.constant 0 : index
    %c0_7 = arith.constant 0 : index
    %8 = vector.load %arg4[%c0_6, %c0_7] : memref<64x32xf32, #tpu.memory_space<vmem>>, vector<64x32xf32>
    %cst_8 = arith.constant dense<0.000000e+00> : vector<16x32xf32>
    %9 = tpu.matmul %7, %8, %cst_8 {dimension_numbers = #tpu.dot_dimension_numbers<[1], [0], [0], [1], [0, 0, 1, 1], [], []>} : vector<16x64xf32>, vector<64x32xf32>, vector<16x32xf32> -> vector<16x32xf32>
    %c0_9 = arith.constant 0 : index
    %c0_10 = arith.constant 0 : index
    %10 = vector.load %arg5[%c0_9, %c0_10] : memref<1x32xf32, #tpu.memory_space<vmem>>, vector<1x32xf32>
    %11 = vector.broadcast %10 : vector<1x32xf32> to vector<16x32xf32>
    %12 = arith.addf %9, %11 : vector<16x32xf32>
    %c0_11 = arith.constant 0 : index
    %c0_12 = arith.constant 0 : index
    %13 = vector.load %arg6[%c0_11, %c0_12] : memref<16x32xf32, #tpu.memory_space<vmem>>, vector<16x32xf32>
    tpu.vector_store %arg6[%c0_11, %c0_12], %12 {strides = array<i32>} : memref<16x32xf32, #tpu.memory_space<vmem>>, vector<16x32xf32>,
    return
  }
  func.func @transform_0(%arg0: i32) -> (i32, i32) {
    %c0_i32 = arith.constant 0 : i32
    %c0_i32_0 = arith.constant 0 : i32
    return %arg0, %c0_i32 : i32, i32
  }
  func.func @transform_1(%arg0: i32) -> (i32, i32) {
    %c0_i32 = arith.constant 0 : i32
    %c0_i32_0 = arith.constant 0 : i32
    %c0_i32_1 = arith.constant 0 : i32
    return %c0_i32, %c0_i32_0 : i32, i32
  }
  func.func @transform_2(%arg0: i32) -> (i32, i32) {
    %c0_i32 = arith.constant 0 : i32
    %c0_i32_0 = arith.constant 0 : i32
    %c0_i32_1 = arith.constant 0 : i32
    return %c0_i32, %c0_i32_0 : i32, i32
  }
  func.func @transform_3(%arg0: i32) -> (i32, i32) {
    %c0_i32 = arith.constant 0 : i32
    %c0_i32_0 = arith.constant 0 : i32
    %c0_i32_1 = arith.constant 0 : i32
    return %c0_i32, %c0_i32_0 : i32, i32
  }
  func.func @transform_4(%arg0: i32) -> (i32, i32) {
    %c0_i32 = arith.constant 0 : i32
    %c0_i32_0 = arith.constant 0 : i32
    %c0_i32_1 = arith.constant 0 : i32
    return %c0_i32, %c0_i32_0 : i32, i32
  }
  func.func @transform_5(%arg0: i32) -> (i32, i32) {
    %c0_i32 = arith.constant 0 : i32
    %c0_i32_0 = arith.constant 0 : i32
    return %arg0, %c0_i32 : i32, i32
  }
}

</mosaic_0001>

<llo_original>
// kernel: positionwise_feedforward.1
$region0: #{positionwise_feedforward.1}
  #allocation0 [shape = 'u32[]', space=smem, size = 0x4, offset = 0x4, fixed_abs, tag = 'smem constant byte address 0x4 - core index']
  #allocation1 [shape = 'u32[72,128]{1,0:T(1,128)}', space=vmem, size = 0x9000, scoped, tag = 'internal scratch']
  %s0 = inlined_call_operand.vmem [shape: f32[16,32], index: 0, kind: input, shape index: {}]
  %s1 = inlined_call_operand.vmem [shape: f32[32,64], index: 1, kind: input, shape index: {}]
  %s2 = inlined_call_operand.vmem [shape: f32[1,64], index: 2, kind: input, shape index: {}]
  %s3 = inlined_call_operand.vmem [shape: f32[64,32], index: 3, kind: input, shape index: {}]
  %s4 = inlined_call_operand.vmem [shape: f32[1,32], index: 4, kind: input, shape index: {}]
  %s5 = inlined_call_operand.hbm [shape: f32[16,32], index: 5, kind: output, shape index: {}]
  %s6 = sld [smem:[#allocation0]]
  $region30: #{positionwise_feedforward.1} parent=0
    _
  %s8 = ssub.s32 1, %s6
  %s9 = scalar_select 0, %s8, %s6
  $region1: #{positionwise_feedforward.1} parent=0
    #allocation2 [shape = 'u8[8192]{0}', space=vmem, size = 0x2000, scoped, tag = 'output window, operand 0, single buffered']
    #allocation3 [shape = 's32[1]{0}', space=sflag, size = 0x4, scoped, tag = 'scoped memory for positionwise_feedforward.1']
    %10 = vsyncpa [#allocation3], 0
    // Predicated region
    $region2: #{positionwise_feedforward.1} parent=1 // pred_check
      _
    $region3: #{positionwise_feedforward.1} parent=1 // pred_check_branch
      %12 = sbr.rel (0) target = $region5
    $region4: #{positionwise_feedforward.1} parent=1 // pred_region
      _
    $region5: #{positionwise_feedforward.1} parent=1 // pred_fallthru
      _
    // Predicated region
    $region6: #{positionwise_feedforward.1} parent=1 // pred_check
      _
    $region7: #{positionwise_feedforward.1} parent=1 // pred_check_branch
      %14 = sbr.rel (0) target = $region9
    $region8: #{positionwise_feedforward.1} parent=1 // pred_region
      _
    $region9: #{positionwise_feedforward.1} parent=1 // pred_fallthru
      _
    // Predicated region
    $region10: #{positionwise_feedforward.1} parent=1 // pred_check
      _
    $region11: #{positionwise_feedforward.1} parent=1 // pred_check_branch
      %16 = sbr.rel (0) target = $region13
    $region12: #{positionwise_feedforward.1} parent=1 // pred_region
      _
    $region13: #{positionwise_feedforward.1} parent=1 // pred_fallthru
      _
    // Predicated region
    $region14: #{positionwise_feedforward.1} parent=1 // pred_check
      _
    $region15: #{positionwise_feedforward.1} parent=1 // pred_check_branch
      %18 = sbr.rel (0) target = $region17
    $region16: #{positionwise_feedforward.1} parent=1 // pred_region
      _
    $region17: #{positionwise_feedforward.1} parent=1 // pred_fallthru
      _
    // Predicated region
    $region18: #{positionwise_feedforward.1} parent=1 // pred_check
      _
    $region19: #{positionwise_feedforward.1} parent=1 // pred_check_branch
      %20 = sbr.rel (0) target = $region21
    $region20: #{positionwise_feedforward.1} parent=1 // pred_region
      _
    $region21: #{positionwise_feedforward.1} parent=1 // pred_fallthru
      _
    %v21 = vld [vmem:[%s0] sm:$0xff]
    %v22 = vld [vmem:[%s0 + $0x8] sm:$0xff]
    %v23 = vld [vmem:[%s1] sm:$0xff]
    %v24 = vld [vmem:[%s1 + $0x8] sm:$0xff]
    %v25 = vld [vmem:[%s1 + $0x10] sm:$0xff]
    %v26 = vld [vmem:[%s1 + $0x18] sm:$0xff]
    %v27 = vld [vmem:[%s2] sm:$0x1]
    %v29 = vperm.slane %v27, 0
    %vm31 = vcmask 261120
    %v33 = vsel %vm31, %v21, 0
    %v36 = vsel %vm31, %v22, 0
    %38 = vmatpush.msra.mxu0 0.0
    %39 = vmatpush.msra.mxu0 0.0
    %40 = vmatpush.msra.mxu0 0.0
    %41 = vmatpush.msra.mxu0 0.0
    %42 = vmatpush.msra.mxu0 0.0
    %43 = vmatpush.msra.mxu0 0.0
    %44 = vmatpush.msra.mxu0 0.0
    %45 = vmatpush.msra.mxu0 0.0
    %46 = vmatpush.msra.mxu0 0.0
    %47 = vmatpush.msra.mxu0 0.0
    %48 = vmatpush.msra.mxu0 0.0
    %49 = vmatpush.msra.mxu0 0.0
    %50 = vmatpush.msra.mxu0 %v26
    %51 = vmatpush.msra.mxu0 %v25
    %52 = vmatpush.msra.mxu0 %v24
    %53 = vmatpush.msra.mxu0 %v23
    %54 = vmatmul.f32.gmra.mxu0 %v33
    %v55 = vpop.f32.mrf.mxu0
    %v56 = vadd.f32 %v29, %v55
    %57 = vmatmul.f32.gmra.mxu0 %v36
    %v58 = vpop.f32.mrf.mxu0
    %v59 = vadd.f32 %v29, %v58
    %60 = vdwg.mxu0
    %v61 = vmax.f32 %v56, 0.0
    %v62 = vmax.f32 %v59, 0.0
    %v63 = vld [vmem:[%s3] sm:$0xff]
    %v64 = vld [vmem:[%s3 + $0x8] sm:$0xff]
    %v65 = vld [vmem:[%s3 + $0x10] sm:$0xff]
    %v66 = vld [vmem:[%s3 + $0x18] sm:$0xff]
    %v67 = vld [vmem:[%s3 + $0x20] sm:$0xff]
    %v68 = vld [vmem:[%s3 + $0x28] sm:$0xff]
    %v69 = vld [vmem:[%s3 + $0x30] sm:$0xff]
    %v70 = vld [vmem:[%s3 + $0x38] sm:$0xff]
    %v71 = vld [vmem:[%s4] sm:$0x1]
    %v73 = vperm.slane %v71, 0
    %vm75 = vcmask 523264
    %v77 = vsel %vm75, %v61, 0
    %v80 = vsel %vm75, %v62, 0
    %82 = vmatpush.msra.mxu0 0.0
    %83 = vmatpush.msra.mxu0 0.0
    %84 = vmatpush.msra.mxu0 0.0
    %85 = vmatpush.msra.mxu0 0.0
    %86 = vmatpush.msra.mxu0 0.0
    %87 = vmatpush.msra.mxu0 0.0
    %88 = vmatpush.msra.mxu0 0.0
    %89 = vmatpush.msra.mxu0 0.0
    %90 = vmatpush.msra.mxu0 %v70
    %91 = vmatpush.msra.mxu0 %v69
    %92 = vmatpush.msra.mxu0 %v68
    %93 = vmatpush.msra.mxu0 %v67
    %94 = vmatpush.msra.mxu0 %v66
    %95 = vmatpush.msra.mxu0 %v65
    %96 = vmatpush.msra.mxu0 %v64
    %97 = vmatpush.msra.mxu0 %v63
    %98 = vmatmul.f32.gmra.mxu0 %v77
    %v99 = vpop.f32.mrf.mxu0
    %v100 = vadd.f32 %v73, %v99
    %101 = vmatmul.f32.gmra.mxu0 %v80
    %v102 = vpop.f32.mrf.mxu0
    %v103 = vadd.f32 %v73, %v102
    %104 = vdwg.mxu0
    %105 = vst.msk [vmem:[#allocation2] sm:$0xff] %vm31, %v100
    %106 = vst.msk [vmem:[#allocation2 + $0x8] sm:$0xff] %vm31, %v103
    // Predicated region
    $region22: #{positionwise_feedforward.1} parent=1 // pred_check
      _
    $region23: #{positionwise_feedforward.1} parent=1 // pred_check_branch
      %108 = sbr.rel (0) target = $region25
    $region24: #{positionwise_feedforward.1} parent=1 // pred_region
      %110 = vsyncadd [#allocation3], 0
      %s111 = sshll.u32 [#allocation2], 4
      %s112 = int_to_ptr.vmem [resolvable:$true] %s111
      %s113 = sshll.u32 %s5, 4
      %s114 = int_to_ptr.hbm [resolvable:$true] %s113
      %119 = dma.vmem_to_hbm [thread:$0]  %s112, 256, %s114, [#allocation3], 128, 128, 8
    $region25: #{positionwise_feedforward.1} parent=1 // pred_fallthru
      _
    // Predicated region
    $region26: #{positionwise_feedforward.1} parent=1 // pred_check
      _
    $region27: #{positionwise_feedforward.1} parent=1 // pred_check_branch
      %121 = sbr.rel (0) target = $region29
    $region28: #{positionwise_feedforward.1} parent=1 // pred_region
      %123 = dma.done [#allocation3], 256
    $region29: #{positionwise_feedforward.1} parent=1 // pred_fallthru
      _
    %124 = vsyncpa [#allocation3], 1

</llo_original>
